<compile_context>
chip_gen: v7x
topology: tpu7x:2x2x1
jax: 0.10.0
libtpu: 0.0.40
codegen_flags: <defaults>
</compile_context>

<pallas_src>
import jax
import jax.numpy as jnp
import numpy as np
from jax.experimental import pallas as pl
from jax.experimental.pallas import tpu as pltpu

# TODO(synk): `config.threshold` in the original code is an external global;
# we pin a deterministic default here (mid-point of the 0..255 range).
DEFAULT_THRESHOLD = 127.5

_LANE = 128        # vreg lane width
_SUBLANE = 8       # f32 vreg sublane count
_MAX_R_TILE = 512  # reduction-axis tile (rows of 128 lanes): 2 MiB/input @ b_tile=8
_MAX_B_TILE = 8


def _round_up(x, m):
    return (x + m - 1) // m * m


def _rowsum(x):
    # (b, r, 128) -> (b, 1): reduce lanes, then rows (both XLU reductions).
    return jnp.sum(jnp.sum(x, axis=2), axis=1, keepdims=True)


def _make_mcc_kernel(threshold, n_true):
    thr = float(threshold)
    n = float(n_true)  # true (unpadded) per-sample element count

    def kernel(inp_ref, tgt_ref, r_ref, st_acc, sp_acc, tp_acc):
        # inp_ref / tgt_ref: (b_tile, r_tile, 128) f32 in VMEM
        # r_ref:             (b_tile, 1) f32 per-batch MCC (written on last k)
        # *_acc:             (b_tile, 1) f32 VMEM accumulators
        k = pl.program_id(1)

        @pl.when(k == 0)
        def _init():
            st_acc[...] = jnp.zeros_like(st_acc)
            sp_acc[...] = jnp.zeros_like(sp_acc)
            tp_acc[...] = jnp.zeros_like(tp_acc)

        # Keep the *255 form (not thr/255) for bit-exact parity at boundaries.
        t = tgt_ref[...] * 255.0
        p = inp_ref[...] * 255.0
        above_t = jnp.where(t >= thr, 1.0, 0.0)
        above_p = jnp.where(p >= thr, 1.0, 0.0)

        st_acc[...] += _rowsum(above_t)
        sp_acc[...] += _rowsum(above_p)
        tp_acc[...] += _rowsum(above_t * above_p)

        @pl.when(k == pl.num_programs(1) - 1)
        def _finalize():
            s_t = st_acc[...]
            s_p = sp_acc[...]
            tp = tp_acc[...]
            fn = s_t - tp
            fp = s_p - tp
            tn = n - s_t - s_p + tp
            num = tp * tn - fp * fn
            den = (tp + fp) * (fn + tp) * (fn + tn) * (fp + tn)
            # num * rsqrt(den): EUP; 0 * inf = NaN preserves torch's 0/0 -> NaN.
            r_ref[...] = num * jax.lax.rsqrt(den)

    return kernel


def mcc_pallas(input, target, threshold=None):
    """Pallas implementation of mcc.forward. input/target: [B, C, H, W] f32."""
    if threshold is None:
        threshold = DEFAULT_THRESHOLD

    B = input.shape[0]
    N = int(np.prod(input.shape[1:]))

    x = input.reshape(B, N).astype(jnp.float32)
    y = target.reshape(B, N).astype(jnp.float32)

    # Pack the reduction axis into dense (8k, 128) tiles. Padding uses a huge
    # negative value so padded pixels never count as "above threshold"; since
    # tn is derived from the true N, padding contributes exactly 0.
    r_rows = _round_up(pl.cdiv(N, _LANE), _SUBLANE)
    r_tile = min(r_rows, _MAX_R_TILE)
    r_rows = _round_up(r_rows, r_tile)
    n_pad = r_rows * _LANE

    b_tile = min(B, _MAX_B_TILE)
    b_pad = _round_up(B, b_tile)

    if n_pad != N or b_pad != B:
        x = jnp.pad(x, ((0, b_pad - B), (0, n_pad - N)), constant_values=-1e30)
        y = jnp.pad(y, ((0, b_pad - B), (0, n_pad - N)), constant_values=-1e30)

    x = x.reshape(b_pad, r_rows, _LANE)
    y = y.reshape(b_pad, r_rows, _LANE)

    grid = (b_pad // b_tile, r_rows // r_tile)  # reduction axis last
    blk = (b_tile, r_tile, _LANE)

    kernel = _make_mcc_kernel(threshold, N)

    r = pl.pallas_call(
        kernel,
        out_shape=jax.ShapeDtypeStruct((b_pad, 1), jnp.float32),
        grid_spec=pltpu.PrefetchScalarGridSpec(
            num_scalar_prefetch=0,
            grid=grid,
            in_specs=[
                pl.BlockSpec(blk, lambda i, k: (i, k, 0)),
                pl.BlockSpec(blk, lambda i, k: (i, k, 0)),
            ],
            out_specs=pl.BlockSpec((b_tile, 1), lambda i, k: (i, 0)),
            scratch_shapes=[pltpu.VMEM((b_tile, 1), jnp.float32)] * 3,
        ),
        compiler_params=pltpu.CompilerParams(
            dimension_semantics=("parallel", "arbitrary"),
            vmem_limit_bytes=32 * 1024 * 1024,
        ),
        cost_estimate=pl.CostEstimate(
            flops=8 * b_pad * n_pad,
            transcendentals=b_pad,
            bytes_accessed=2 * b_pad * n_pad * 4 + b_pad * 4,
        ),
    )(x, y)

    # Per-batch r -> batch mean (padded batch rows, if any, are sliced off).
    return jnp.mean(r[:B, 0])


def mcc_reference(input, target, threshold=DEFAULT_THRESHOLD):
    """Pure-JAX reference mirroring the PyTorch forward exactly."""
    t = target * 255.0
    p = input * 255.0
    axes = tuple(range(1, t.ndim))
    above_t = jnp.where(t >= threshold, 1.0, 0.0)
    under_t = jnp.where(t < threshold, 1.0, 0.0)
    above_p = jnp.where(p >= threshold, 1.0, 0.0)
    under_p = jnp.where(p < threshold, 1.0, 0.0)
    tp = jnp.sum(above_t * above_p, axis=axes)
    fn = jnp.sum(above_t * under_p, axis=axes)
    tn = jnp.sum(under_t * under_p, axis=axes)
    fp = jnp.sum(under_t * above_p, axis=axes)
    r = (tp * tn - fp * fn) / ((tp + fp) * (fn + tp) * (fn + tn) * (fp + tn)) ** 0.5
    return jnp.mean(r)


if __name__ == "__main__":
    key = jax.random.PRNGKey(0)
    k1, k2 = jax.random.split(key)
    B, C, H, W = 2, 4, 16, 16
    x = jax.random.uniform(k1, (B, C, H, W), dtype=jnp.float32)  # "input"
    y = jax.random.uniform(k2, (B, C, H, W), dtype=jnp.float32)  # "target"

    out = mcc_pallas(x, y)
    out = jax.block_until_ready(out)

    ref = mcc_reference(x, y)
    np.testing.assert_allclose(np.asarray(out), np.asarray(ref), rtol=1e-5, atol=2e-5)

    print("KERNEL_OK")
</pallas_src>

<mosaic_0001>
module attributes {stable_mosaic.version = 11 : i64} {
  func.func @kernel(%arg0: i32, %arg1: i32, %arg2: memref<2x8x128xf32, #tpu.memory_space<vmem>>, %arg3: memref<2x8x128xf32, #tpu.memory_space<vmem>>, %arg4: memref<2x1xf32, #tpu.memory_space<vmem>>, %arg5: memref<2x1xf32, #tpu.memory_space<vmem>>, %arg6: memref<2x1xf32, #tpu.memory_space<vmem>>, %arg7: memref<2x1xf32, #tpu.memory_space<vmem>>) attributes {dimension_semantics = [#tpu.dimension_semantics<parallel>, #tpu.dimension_semantics<arbitrary>], iteration_bounds = array<i64: 1, 1>, scalar_prefetch = 0 : i64, scratch_operands = 3 : i64, tpu.core_type = #tpu.core_type<tc>, window_params = [{transform_indices = @transform_0, window_bounds = array<i64: 2, 8, 128>}, {transform_indices = @transform_1, window_bounds = array<i64: 2, 8, 128>}, {transform_indices = @transform_2, window_bounds = array<i64: 2, 1>}]} {
    %c0_i32 = arith.constant 0 : i32
    %0 = arith.cmpi eq, %arg1, %c0_i32 : i32
    %1 = arith.extui %0 : i1 to i32
    %c0_i32_0 = arith.constant 0 : i32
    %2 = arith.cmpi ne, %1, %c0_i32_0 : i32
    scf.if %2 {
      %cst_33 = arith.constant 0.000000e+00 : f32
      %41 = vector.broadcast %cst_33 : f32 to vector<2x1xf32>
      %c0_34 = arith.constant 0 : index
      %c0_35 = arith.constant 0 : index
      %42 = vector.load %arg5[%c0_34, %c0_35] : memref<2x1xf32, #tpu.memory_space<vmem>>, vector<2x1xf32>
      tpu.vector_store %arg5[%c0_34, %c0_35], %41 {strides = array<i32>} : memref<2x1xf32, #tpu.memory_space<vmem>>, vector<2x1xf32>,
      %cst_36 = arith.constant 0.000000e+00 : f32
      %43 = vector.broadcast %cst_36 : f32 to vector<2x1xf32>
      %c0_37 = arith.constant 0 : index
      %c0_38 = arith.constant 0 : index
      %44 = vector.load %arg6[%c0_37, %c0_38] : memref<2x1xf32, #tpu.memory_space<vmem>>, vector<2x1xf32>
      tpu.vector_store %arg6[%c0_37, %c0_38], %43 {strides = array<i32>} : memref<2x1xf32, #tpu.memory_space<vmem>>, vector<2x1xf32>,
      %cst_39 = arith.constant 0.000000e+00 : f32
      %45 = vector.broadcast %cst_39 : f32 to vector<2x1xf32>
      %c0_40 = arith.constant 0 : index
      %c0_41 = arith.constant 0 : index
      %46 = vector.load %arg7[%c0_40, %c0_41] : memref<2x1xf32, #tpu.memory_space<vmem>>, vector<2x1xf32>
      tpu.vector_store %arg7[%c0_40, %c0_41], %45 {strides = array<i32>} : memref<2x1xf32, #tpu.memory_space<vmem>>, vector<2x1xf32>,
    } else {
    }
    %c0 = arith.constant 0 : index
    %c0_1 = arith.constant 0 : index
    %c0_2 = arith.constant 0 : index
    %3 = vector.load %arg3[%c0, %c0_1, %c0_2] : memref<2x8x128xf32, #tpu.memory_space<vmem>>, vector<2x8x128xf32>
    %cst = arith.constant 2.550000e+02 : f32
    %4 = vector.broadcast %cst : f32 to vector<2x8x128xf32>
    %5 = arith.mulf %3, %4 : vector<2x8x128xf32>
    %c0_3 = arith.constant 0 : index
    %c0_4 = arith.constant 0 : index
    %c0_5 = arith.constant 0 : index
    %6 = vector.load %arg2[%c0_3, %c0_4, %c0_5] : memref<2x8x128xf32, #tpu.memory_space<vmem>>, vector<2x8x128xf32>
    %cst_6 = arith.constant 2.550000e+02 : f32
    %7 = vector.broadcast %cst_6 : f32 to vector<2x8x128xf32>
    %8 = arith.mulf %6, %7 : vector<2x8x128xf32>
    %cst_7 = arith.constant 1.275000e+02 : f32
    %9 = vector.broadcast %cst_7 : f32 to vector<2x8x128xf32>
    %10 = arith.cmpf oge, %5, %9 : vector<2x8x128xf32>
    %cst_8 = arith.constant 1.000000e+00 : f32
    %cst_9 = arith.constant 0.000000e+00 : f32
    %11 = vector.broadcast %cst_8 : f32 to vector<2x8x128xf32>
    %12 = vector.broadcast %cst_9 : f32 to vector<2x8x128xf32>
    %13 = arith.select %10, %11, %12 : vector<2x8x128xi1>, vector<2x8x128xf32>
    %cst_10 = arith.constant 1.275000e+02 : f32
    %14 = vector.broadcast %cst_10 : f32 to vector<2x8x128xf32>
    %15 = arith.cmpf oge, %8, %14 : vector<2x8x128xf32>
    %cst_11 = arith.constant 1.000000e+00 : f32
    %cst_12 = arith.constant 0.000000e+00 : f32
    %16 = vector.broadcast %cst_11 : f32 to vector<2x8x128xf32>
    %17 = vector.broadcast %cst_12 : f32 to vector<2x8x128xf32>
    %18 = arith.select %15, %16, %17 : vector<2x8x128xi1>, vector<2x8x128xf32>
    %c0_13 = arith.constant 0 : index
    %c0_14 = arith.constant 0 : index
    %19 = vector.load %arg5[%c0_13, %c0_14] : memref<2x1xf32, #tpu.memory_space<vmem>>, vector<2x1xf32>
    %cst_15 = arith.constant dense<0.000000e+00> : vector<2x8xf32>
    %20 = vector.multi_reduction <add>, %13, %cst_15 [2] : vector<2x8x128xf32> to vector<2x8xf32>
    %cst_16 = arith.constant dense<0.000000e+00> : vector<2xf32>
    %21 = vector.multi_reduction <add>, %20, %cst_16 [1] : vector<2x8xf32> to vector<2xf32>
    %22 = vector.shape_cast %21 : vector<2xf32> to vector<2x1xf32>
    %23 = arith.addf %19, %22 : vector<2x1xf32>
    %c0_17 = arith.constant 0 : index
    %c0_18 = arith.constant 0 : index
    %24 = vector.load %arg5[%c0_17, %c0_18] : memref<2x1xf32, #tpu.memory_space<vmem>>, vector<2x1xf32>
    tpu.vector_store %arg5[%c0_17, %c0_18], %23 {strides = array<i32>} : memref<2x1xf32, #tpu.memory_space<vmem>>, vector<2x1xf32>,
    %c0_19 = arith.constant 0 : index
    %c0_20 = arith.constant 0 : index
    %25 = vector.load %arg6[%c0_19, %c0_20] : memref<2x1xf32, #tpu.memory_space<vmem>>, vector<2x1xf32>
    %cst_21 = arith.constant dense<0.000000e+00> : vector<2x8xf32>
    %26 = vector.multi_reduction <add>, %18, %cst_21 [2] : vector<2x8x128xf32> to vector<2x8xf32>
    %cst_22 = arith.constant dense<0.000000e+00> : vector<2xf32>
    %27 = vector.multi_reduction <add>, %26, %cst_22 [1] : vector<2x8xf32> to vector<2xf32>
    %28 = vector.shape_cast %27 : vector<2xf32> to vector<2x1xf32>
    %29 = arith.addf %25, %28 : vector<2x1xf32>
    %c0_23 = arith.constant 0 : index
    %c0_24 = arith.constant 0 : index
    %30 = vector.load %arg6[%c0_23, %c0_24] : memref<2x1xf32, #tpu.memory_space<vmem>>, vector<2x1xf32>
    tpu.vector_store %arg6[%c0_23, %c0_24], %29 {strides = array<i32>} : memref<2x1xf32, #tpu.memory_space<vmem>>, vector<2x1xf32>,
    %c0_25 = arith.constant 0 : index
    %c0_26 = arith.constant 0 : index
    %31 = vector.load %arg7[%c0_25, %c0_26] : memref<2x1xf32, #tpu.memory_space<vmem>>, vector<2x1xf32>
    %32 = arith.mulf %13, %18 : vector<2x8x128xf32>
    %cst_27 = arith.constant dense<0.000000e+00> : vector<2x8xf32>
    %33 = vector.multi_reduction <add>, %32, %cst_27 [2] : vector<2x8x128xf32> to vector<2x8xf32>
    %cst_28 = arith.constant dense<0.000000e+00> : vector<2xf32>
    %34 = vector.multi_reduction <add>, %33, %cst_28 [1] : vector<2x8xf32> to vector<2xf32>
    %35 = vector.shape_cast %34 : vector<2xf32> to vector<2x1xf32>
    %36 = arith.addf %31, %35 : vector<2x1xf32>
    %c0_29 = arith.constant 0 : index
    %c0_30 = arith.constant 0 : index
    %37 = vector.load %arg7[%c0_29, %c0_30] : memref<2x1xf32, #tpu.memory_space<vmem>>, vector<2x1xf32>
    tpu.vector_store %arg7[%c0_29, %c0_30], %36 {strides = array<i32>} : memref<2x1xf32, #tpu.memory_space<vmem>>, vector<2x1xf32>,
    %c0_i32_31 = arith.constant 0 : i32
    %38 = arith.cmpi eq, %arg1, %c0_i32_31 : i32
    %39 = arith.extui %38 : i1 to i32
    %c0_i32_32 = arith.constant 0 : i32
    %40 = arith.cmpi ne, %39, %c0_i32_32 : i32
    scf.if %40 {
      %c0_33 = arith.constant 0 : index
      %c0_34 = arith.constant 0 : index
      %41 = vector.load %arg5[%c0_33, %c0_34] : memref<2x1xf32, #tpu.memory_space<vmem>>, vector<2x1xf32>
      %c0_35 = arith.constant 0 : index
      %c0_36 = arith.constant 0 : index
      %42 = vector.load %arg6[%c0_35, %c0_36] : memref<2x1xf32, #tpu.memory_space<vmem>>, vector<2x1xf32>
      %c0_37 = arith.constant 0 : index
      %c0_38 = arith.constant 0 : index
      %43 = vector.load %arg7[%c0_37, %c0_38] : memref<2x1xf32, #tpu.memory_space<vmem>>, vector<2x1xf32>
      %44 = arith.subf %41, %43 : vector<2x1xf32>
      %45 = arith.subf %42, %43 : vector<2x1xf32>
      %cst_39 = arith.constant 1.024000e+03 : f32
      %46 = vector.broadcast %cst_39 : f32 to vector<2x1xf32>
      %47 = arith.subf %46, %41 : vector<2x1xf32>
      %48 = arith.subf %47, %42 : vector<2x1xf32>
      %49 = arith.addf %48, %43 : vector<2x1xf32>
      %50 = arith.mulf %43, %49 : vector<2x1xf32>
      %51 = arith.mulf %45, %44 : vector<2x1xf32>
      %52 = arith.subf %50, %51 : vector<2x1xf32>
      %53 = arith.addf %43, %45 : vector<2x1xf32>
      %54 = arith.addf %44, %43 : vector<2x1xf32>
      %55 = arith.mulf %53, %54 : vector<2x1xf32>
      %56 = arith.addf %44, %49 : vector<2x1xf32>
      %57 = arith.mulf %55, %56 : vector<2x1xf32>
      %58 = arith.addf %45, %49 : vector<2x1xf32>
      %59 = arith.mulf %57, %58 : vector<2x1xf32>
      %60 = math.rsqrt %59 : vector<2x1xf32>
      %61 = arith.mulf %52, %60 : vector<2x1xf32>
      %c0_40 = arith.constant 0 : index
      %c0_41 = arith.constant 0 : index
      %62 = vector.load %arg4[%c0_40, %c0_41] : memref<2x1xf32, #tpu.memory_space<vmem>>, vector<2x1xf32>
      tpu.vector_store %arg4[%c0_40, %c0_41], %61 {strides = array<i32>} : memref<2x1xf32, #tpu.memory_space<vmem>>, vector<2x1xf32>,
    } else {
    }
    return
  }
  func.func @transform_0(%arg0: i32, %arg1: i32) -> (i32, i32, i32) {
    %c0_i32 = arith.constant 0 : i32
    %c0_i32_0 = arith.constant 0 : i32
    return %arg0, %arg1, %c0_i32 : i32, i32, i32
  }
  func.func @transform_1(%arg0: i32, %arg1: i32) -> (i32, i32, i32) {
    %c0_i32 = arith.constant 0 : i32
    %c0_i32_0 = arith.constant 0 : i32
    return %arg0, %arg1, %c0_i32 : i32, i32, i32
  }
  func.func @transform_2(%arg0: i32, %arg1: i32) -> (i32, i32) {
    %c0_i32 = arith.constant 0 : i32
    %c0_i32_0 = arith.constant 0 : i32
    return %arg0, %c0_i32 : i32, i32
  }
}

</mosaic_0001>

<llo_original>
// kernel: tpu_custom_call.1
$region0: #{tpu_custom_call.1}
  #allocation0 [shape = 'u32[]', space=smem, size = 0x4, offset = 0x4, fixed_abs, tag = 'smem constant byte address 0x4 - core index']
  #allocation1 [shape = 'u32[144,128]{1,0:T(1,128)}', space=vmem, size = 0x12000, scoped, tag = 'internal scratch']
  #allocation2 [shape = 'f32[2,1]{1,0:T(2,128)}', space=vmem, size = 0x400, scoped, tag = 'scratch operand']
  #allocation3 [shape = 'f32[2,1]{1,0:T(2,128)}', space=vmem, size = 0x400, scoped, tag = 'scratch operand']
  #allocation4 [shape = 'f32[2,1]{1,0:T(2,128)}', space=vmem, size = 0x400, scoped, tag = 'scratch operand']
  %s0 = inlined_call_operand.hbm [shape: f32[2,8,128], index: 0, kind: input, shape index: {}]
  %s1 = inlined_call_operand.hbm [shape: f32[2,8,128], index: 1, kind: input, shape index: {}]
  %s2 = inlined_call_operand.vmem [shape: f32[2,1], index: 2, kind: output, shape index: {}]
  %s3 = sld [smem:[#allocation0]]
  $region34: #{tpu_custom_call.1} parent=0
    _
  %s5 = ssub.s32 1, %s3
  %s6 = scalar_select 0, %s5, %s3
  $region1: #{tpu_custom_call.1} parent=0
    #allocation5 [shape = 'u8[8192]{0}', space=vmem, size = 0x2000, scoped, tag = 'input window, operand 0, single buffered']
    #allocation6 [shape = 's32[1]{0}', space=sflag, size = 0x4, scoped, tag = 'scoped memory for tpu_custom_call.1']
    #allocation7 [shape = 'u8[8192]{0}', space=vmem, size = 0x2000, scoped, tag = 'input window, operand 1, single buffered']
    #allocation8 [shape = 's32[1]{0}', space=sflag, size = 0x4, scoped, tag = 'scoped memory for tpu_custom_call.1']
    %7 = vsyncpa [#allocation6], 0
    %8 = vsyncpa [#allocation8], 0
    // Predicated region
    $region2: #{tpu_custom_call.1} parent=1 // pred_check
      _
    $region3: #{tpu_custom_call.1} parent=1 // pred_check_branch
      %10 = sbr.rel (0) target = $region5
    $region4: #{tpu_custom_call.1} parent=1 // pred_region
      %s12 = ssub.s32 256, 256
      %13 = vsyncadd [#allocation6], %s12
      %s14 = sshll.u32 [#allocation5], 4
      %s15 = int_to_ptr.vmem [resolvable:$true] %s14
      %20 = dma.hbm_to_vmem [thread:$0]  %s0, 256, %s15, [#allocation6], 128, 128, 8
    $region5: #{tpu_custom_call.1} parent=1 // pred_fallthru
      _
    // Predicated region
    $region6: #{tpu_custom_call.1} parent=1 // pred_check
      _
    $region7: #{tpu_custom_call.1} parent=1 // pred_check_branch
      %22 = sbr.rel (0) target = $region9
    $region8: #{tpu_custom_call.1} parent=1 // pred_region
      %s24 = ssub.s32 256, 256
      %25 = vsyncadd [#allocation8], %s24
      %s26 = sshll.u32 [#allocation7], 4
      %s27 = int_to_ptr.vmem [resolvable:$true] %s26
      %32 = dma.hbm_to_vmem [thread:$0]  %s1, 256, %s27, [#allocation8], 128, 128, 8
    $region9: #{tpu_custom_call.1} parent=1 // pred_fallthru
      _
    // Predicated region
    $region10: #{tpu_custom_call.1} parent=1 // pred_check
      _
    $region11: #{tpu_custom_call.1} parent=1 // pred_check_branch
      %34 = sbr.rel (0) target = $region13
    $region12: #{tpu_custom_call.1} parent=1 // pred_region
      %35 = dma.done [#allocation6], 256
    $region13: #{tpu_custom_call.1} parent=1 // pred_fallthru
      _
    // Predicated region
    $region14: #{tpu_custom_call.1} parent=1 // pred_check
      _
    $region15: #{tpu_custom_call.1} parent=1 // pred_check_branch
      %37 = sbr.rel (0) target = $region17
    $region16: #{tpu_custom_call.1} parent=1 // pred_region
      %38 = dma.done [#allocation8], 256
    $region17: #{tpu_custom_call.1} parent=1 // pred_fallthru
      _
    %p39 = scmp.eq.s32.totalorder 0, 0
    // Predicated region
    $region18: #{tpu_custom_call.1} parent=1 // pred_check
      %p40 = pneg %p39
    $region19: #{tpu_custom_call.1} parent=1 // pred_check_branch
      %42 = sbr.rel (%p40) target = $region21
    $region20: #{tpu_custom_call.1} parent=1 // pred_region
      %vm43 = vcmask 1024
      %44 = vst.msk [vmem:[#allocation2] sm:$0x3] %vm43, 0.0
      %45 = vst.msk [vmem:[#allocation3] sm:$0x3] %vm43, 0.0
      %46 = vst.msk [vmem:[#allocation4] sm:$0x3] %vm43, 0.0
    $region21: #{tpu_custom_call.1} parent=1 // pred_fallthru
      _
    %v47 = vld [vmem:[#allocation7] sm:$0xff]
    %v48 = vld [vmem:[#allocation7 + $0x8] sm:$0xff]
    %v49 = vmul.f32 %v47, 255.0
    %v50 = vmul.f32 %v48, 255.0
    %v51 = vld [vmem:[#allocation5] sm:$0xff]
    %v52 = vld [vmem:[#allocation5 + $0x8] sm:$0xff]
    %v53 = vmul.f32 %v51, 255.0
    %v54 = vmul.f32 %v52, 255.0
    %vm55 = vcmp.ge.f32.partialorder %v49, 127.5
    %vm56 = vcmp.ge.f32.partialorder %v50, 127.5
    %v57 = vsel %vm55, 1.0, 0.0
    %v58 = vsel %vm56, 1.0, 0.0
    %vm59 = vcmp.ge.f32.partialorder %v53, 127.5
    %vm60 = vcmp.ge.f32.partialorder %v54, 127.5
    %v61 = vsel %vm59, 1.0, 0.0
    %v62 = vsel %vm60, 1.0, 0.0
    %v63 = vld [vmem:[#allocation2] sm:$0x3]
    %64 = vadd.xlane.f32.xlu0 %v57
    %v65 = vpop.xlane.xlu0 %64
    %66 = vadd.xlane.f32.xlu0 %v58
    %v67 = vpop.xlane.xlu0 %66
    %v70 = vlaneseq
    %v71 = vand.u32 %v70, 127
    %v72 = vlaneseq
    %v73 = vshrl.u32 %v72, 7
    %v74 = vsub.s32 %v71, %v73
    %v75 = vrot.slane %v65, %v74
    %v76 = vlaneseq
    %v77 = vshrl.u32 %v76, 7
    %v78 = vsub.s32 %v71, %v77
    %v79 = vrot.slane %v67, %v78
    %vm80 = vcmask 1041409
    %v81 = vsel %vm80, %v79, %v75
    %vm83 = vcmask 58368
    %v84 = vsel %vm83, %v81, 0.0
    %85 = vadd.xlane.f32.xlu0 %v84
    %v86 = vpop.xlane.xlu0 %85
    %v87 = vadd.f32 %v63, %v86
    %vm88 = vcmask 1024
    %89 = vst.msk [vmem:[#allocation2] sm:$0x3] %vm88, %v87
    %v90 = vld [vmem:[#allocation3] sm:$0x3]
    %91 = vadd.xlane.f32.xlu0 %v61
    %v92 = vpop.xlane.xlu0 %91
    %93 = vadd.xlane.f32.xlu0 %v62
    %v94 = vpop.xlane.xlu0 %93
    %v97 = vlaneseq
    %v98 = vshrl.u32 %v97, 7
    %v99 = vsub.s32 %v71, %v98
    %v100 = vrot.slane %v92, %v99
    %v101 = vlaneseq
    %v102 = vshrl.u32 %v101, 7
    %v103 = vsub.s32 %v71, %v102
    %v104 = vrot.slane %v94, %v103
    %v105 = vsel %vm80, %v104, %v100
    %v107 = vsel %vm83, %v105, 0.0
    %108 = vadd.xlane.f32.xlu0 %v107
    %v109 = vpop.xlane.xlu0 %108
    %v110 = vadd.f32 %v90, %v109
    %111 = vst.msk [vmem:[#allocation3] sm:$0x3] %vm88, %v110
    %v112 = vld [vmem:[#allocation4] sm:$0x3]
    %v113 = vmul.f32 %v57, %v61
    %v114 = vmul.f32 %v58, %v62
    %115 = vadd.xlane.f32.xlu0 %v113
    %v116 = vpop.xlane.xlu0 %115
    %117 = vadd.xlane.f32.xlu0 %v114
    %v118 = vpop.xlane.xlu0 %117
    %v121 = vlaneseq
    %v122 = vshrl.u32 %v121, 7
    %v123 = vsub.s32 %v71, %v122
    %v124 = vrot.slane %v116, %v123
    %v125 = vlaneseq
    %v126 = vshrl.u32 %v125, 7
    %v127 = vsub.s32 %v71, %v126
    %v128 = vrot.slane %v118, %v127
    %v129 = vsel %vm80, %v128, %v124
    %v131 = vsel %vm83, %v129, 0.0
    %132 = vadd.xlane.f32.xlu0 %v131
    %v133 = vpop.xlane.xlu0 %132
    %v134 = vadd.f32 %v112, %v133
    %135 = vst.msk [vmem:[#allocation4] sm:$0x3] %vm88, %v134
    // Predicated region
    $region22: #{tpu_custom_call.1} parent=1 // pred_check
      %p136 = pneg %p39
    $region23: #{tpu_custom_call.1} parent=1 // pred_check_branch
      %138 = sbr.rel (%p136) target = $region25
    $region24: #{tpu_custom_call.1} parent=1 // pred_region
      %v139 = vld [vmem:[#allocation2] sm:$0x3]
      %v140 = vld [vmem:[#allocation3] sm:$0x3]
      %v141 = vld [vmem:[#allocation4] sm:$0x3]
      %v142 = vsub.f32 %v139, %v141
      %v143 = vsub.f32 %v140, %v141
      %v144 = vsub.f32 1024.0, %v139
      %v145 = vsub.f32 %v144, %v140
      %v146 = vadd.f32 %v145, %v141
      %v147 = vmul.f32 %v141, %v146
      %v148 = vmul.f32 %v143, %v142
      %v149 = vsub.f32 %v147, %v148
      %v150 = vadd.f32 %v141, %v143
      %v151 = vadd.f32 %v142, %v141
      %v152 = vmul.f32 %v150, %v151
      %v153 = vadd.f32 %v142, %v146
      %v154 = vmul.f32 %v152, %v153
      %v155 = vadd.f32 %v143, %v146
      %v156 = vmul.f32 %v154, %v155
      %v157 = vrsqrt.pop %v156
      %v158 = vmul.f32 %v149, %v157
      %159 = vst.msk [vmem:[%s2] sm:$0x3] %vm88, %v158
    $region25: #{tpu_custom_call.1} parent=1 // pred_fallthru
      _
    // Predicated region
    $region26: #{tpu_custom_call.1} parent=1 // pred_check
      _
    $region27: #{tpu_custom_call.1} parent=1 // pred_check_branch
      %161 = sbr.rel (0) target = $region29
    $region28: #{tpu_custom_call.1} parent=1 // pred_region
      _
    $region29: #{tpu_custom_call.1} parent=1 // pred_fallthru
      _
    // Predicated region
    $region30: #{tpu_custom_call.1} parent=1 // pred_check
      _
    $region31: #{tpu_custom_call.1} parent=1 // pred_check_branch
      %163 = sbr.rel (0) target = $region33
    $region32: #{tpu_custom_call.1} parent=1 // pred_region
      _
    $region33: #{tpu_custom_call.1} parent=1 // pred_fallthru
      _
    %164 = vsyncpa [#allocation6], 1
    %165 = vsyncpa [#allocation8], 1

</llo_original>
